<compile_context>
chip_gen: v5e
topology: v5e:2x2
jax: 0.10.0
libtpu: 0.0.40
codegen_flags: <defaults>
</compile_context>

<pallas_src>
import jax
import jax.numpy as jnp
from jax.experimental import pallas as pl
from jax.experimental.pallas import tpu as pltpu


def _round_up(n, m):
    return ((n + m - 1) // m) * m


def _softplus(x):
    # Match torch.nn.functional.softplus (beta=1, threshold=20):
    # returns x where x > 20, else log1p(exp(x)).
    safe = jnp.minimum(x, 20.0)
    return jnp.where(x > 20.0, x, jnp.log1p(jnp.exp(safe)))


def geoblock_kernel(x_ref, w1_ref, b1_ref, w2_ref, b2_ref, o_ref):
    # x_ref: (in_dim, tn) activation tile -- features on sublanes, tokens on lanes.
    x = x_ref[...].astype(jnp.float32)
    # fc_mul_in: (inter_dim, in_dim) @ (in_dim, tn) -> (inter_dim, tn)
    h = jnp.dot(w1_ref[...], x, preferred_element_type=jnp.float32) + b1_ref[...]
    h = _softplus(h)
    # fc_mul_out: (out_dim, inter_dim) @ (inter_dim, tn) -> (out_dim, tn)
    y = jnp.dot(w2_ref[...], h, preferred_element_type=jnp.float32) + b2_ref[...]
    # TODO(synk): dropout implemented as identity (inference mode); a training
    # variant would build the mask with pltpu.prng_seed + pltpu.prng_random_bits.
    o_ref[...] = (y + x).astype(o_ref.dtype)                  # residual add


def geoblock_forward(x, w1, b1, w2, b2, *, tn=512, act_dtype=None):
    """GeoBlock forward.

    x : [..., in_dim]            (leading dims are flattened into tokens)
    w1: [inter_dim, in_dim]      (PyTorch nn.Linear weight layout: (out, in))
    b1: [inter_dim]
    w2: [out_dim, inter_dim]
    b2: [out_dim]
    tn: token tile on the 128-lane axis (multiple of 128; sweep 512-2048).
    act_dtype: dtype used for activation HBM<->VMEM traffic (e.g. jnp.bfloat16);
               accumulation and softplus are always f32 inside the kernel.
    """
    orig_shape = x.shape
    in_dim = orig_shape[-1]
    inter_dim = w1.shape[0]
    out_dim = w2.shape[0]
    assert w1.shape == (inter_dim, in_dim)
    assert w2.shape == (out_dim, inter_dim)
    assert in_dim == out_dim, "residual add requires in_dim == out_dim"
    assert tn % 128 == 0

    if act_dtype is None:
        act_dtype = x.dtype

    n_tokens = 1
    for d in orig_shape[:-1]:
        n_tokens *= d

    # Lane-dense [D, N] layout: tokens on the 128-lane axis.
    x_dn = x.reshape(n_tokens, in_dim).T.astype(act_dtype)      # (in_dim, N)

    # Pad ragged token counts up to a multiple of the tile (keeps the big tile).
    tn_eff = min(tn, _round_up(max(n_tokens, 1), 128))
    n_pad = _round_up(n_tokens, tn_eff)
    if n_pad != n_tokens:
        x_dn = jnp.pad(x_dn, ((0, 0), (0, n_pad - n_tokens)))

    # Weights/biases stay f32 (resident in VMEM; negligible bandwidth).
    w1f = w1.astype(jnp.float32)
    w2f = w2.astype(jnp.float32)
    b1f = b1.reshape(inter_dim, 1).astype(jnp.float32)
    b2f = b2.reshape(out_dim, 1).astype(jnp.float32)

    grid = (n_pad // tn_eff,)

    act_bytes = jnp.dtype(act_dtype).itemsize
    cost = pl.CostEstimate(
        flops=2 * n_pad * inter_dim * (in_dim + out_dim)
        + 3 * n_pad * (inter_dim + out_dim),
        transcendentals=2 * n_pad * inter_dim,                  # exp + log1p
        bytes_accessed=2 * n_pad * in_dim * act_bytes
        + 4 * (inter_dim * in_dim + out_dim * inter_dim + inter_dim + out_dim),
    )

    out_dn = pl.pallas_call(
        geoblock_kernel,
        out_shape=jax.ShapeDtypeStruct((out_dim, n_pad), act_dtype),
        grid_spec=pltpu.PrefetchScalarGridSpec(
            num_scalar_prefetch=0,
            grid=grid,
            in_specs=[
                pl.BlockSpec((in_dim, tn_eff), lambda i: (0, i)),      # X tile
                pl.BlockSpec((inter_dim, in_dim), lambda i: (0, 0)),   # W1 (resident)
                pl.BlockSpec((inter_dim, 1), lambda i: (0, 0)),        # b1
                pl.BlockSpec((out_dim, inter_dim), lambda i: (0, 0)),  # W2 (resident)
                pl.BlockSpec((out_dim, 1), lambda i: (0, 0)),          # b2
            ],
            out_specs=pl.BlockSpec((out_dim, tn_eff), lambda i: (0, i)),
        ),
        compiler_params=pltpu.CompilerParams(
            dimension_semantics=("parallel",),   # shards token tiles across TCs (v7x)
        ),
        cost_estimate=cost,
    )(x_dn, w1f, b1f, w2f, b2f)

    out = out_dn[:, :n_tokens].T                                # (N, out_dim)
    return out.reshape(orig_shape[:-1] + (out_dim,))


def geoblock_reference(x, w1, b1, w2, b2):
    # Pure-JAX reference; weights in PyTorch (out, in) layout.
    h = jnp.logaddexp(0.0, x @ w1.T + b1)        # softplus
    y = h @ w2.T + b2
    return y + x


if __name__ == "__main__":
    # Module config: in_dim = out_dim = 32, inter_dim_factor = 1 -> inter_dim = 32.
    in_dim = 32
    out_dim = 32
    inter_dim = 1 * out_dim
    batch, seq = 2, 8

    key = jax.random.PRNGKey(0)
    kx, kw1, kb1, kw2, kb2, kx2 = jax.random.split(key, 6)

    # Deterministic parameter init (synthetic; mimics small uniform init).
    bound1 = 1.0 / (in_dim ** 0.5)
    bound2 = 1.0 / (inter_dim ** 0.5)
    # PyTorch Linear weight layout (out, in) is consumed directly.
    w1 = jax.random.uniform(kw1, (inter_dim, in_dim), jnp.float32, -bound1, bound1)
    b1 = jax.random.uniform(kb1, (inter_dim,), jnp.float32, -bound1, bound1)
    w2 = jax.random.uniform(kw2, (out_dim, inter_dim), jnp.float32, -bound2, bound2)
    b2 = jax.random.uniform(kb2, (out_dim,), jnp.float32, -bound2, bound2)

    # Small input matching the module's (batch, seq, in_dim) view; f32 path.
    x3 = jax.random.normal(kx, (batch, seq, in_dim), jnp.float32)
    out = jax.block_until_ready(geoblock_forward(x3, w1, b1, w2, b2))
    ref = geoblock_reference(x3, w1, b1, w2, b2)
    assert out.shape == (batch, seq, out_dim)
    assert jnp.allclose(out, ref, atol=1e-4, rtol=1e-4), "f32 mismatch vs reference"

    # Larger, ragged token count: exercises wrapper padding, a multi-step
    # parallel grid (2100 tokens -> pad 2560, grid=5), and bf16 activation I/O
    # with f32 accumulation inside the kernel.
    xl = jax.random.normal(kx2, (3, 700, in_dim), jnp.float32)
    out_bf = jax.block_until_ready(
        geoblock_forward(xl, w1, b1, w2, b2, tn=512, act_dtype=jnp.bfloat16))
    ref_bf = geoblock_reference(xl, w1, b1, w2, b2)
    assert out_bf.shape == (3, 700, out_dim)
    assert out_bf.dtype == jnp.bfloat16
    assert jnp.allclose(out_bf.astype(jnp.float32), ref_bf, atol=6e-2, rtol=6e-2), \
        "bf16 mismatch vs reference"

    print("KERNEL_OK")
</pallas_src>

<mosaic_0001>
module attributes {stable_mosaic.version = 11 : i64} {
  func.func @geoblock_kernel(%arg0: i32, %arg1: memref<32x128xf32, #tpu.memory_space<vmem>>, %arg2: memref<32x32xf32, #tpu.memory_space<vmem>>, %arg3: memref<32x1xf32, #tpu.memory_space<vmem>>, %arg4: memref<32x32xf32, #tpu.memory_space<vmem>>, %arg5: memref<32x1xf32, #tpu.memory_space<vmem>>, %arg6: memref<32x128xf32, #tpu.memory_space<vmem>>) attributes {dimension_semantics = [#tpu.dimension_semantics<parallel>], iteration_bounds = array<i64: 1>, scalar_prefetch = 0 : i64, scratch_operands = 0 : i64, tpu.core_type = #tpu.core_type<tc>, window_params = [{transform_indices = @transform_0, window_bounds = array<i64: 32, 128>}, {pipeline_mode = #tpu.pipeline_mode<synchronous>, transform_indices = @transform_1, window_bounds = array<i64: 32, 32>}, {pipeline_mode = #tpu.pipeline_mode<synchronous>, transform_indices = @transform_2, window_bounds = array<i64: 32, 1>}, {pipeline_mode = #tpu.pipeline_mode<synchronous>, transform_indices = @transform_3, window_bounds = array<i64: 32, 32>}, {pipeline_mode = #tpu.pipeline_mode<synchronous>, transform_indices = @transform_4, window_bounds = array<i64: 32, 1>}, {transform_indices = @transform_5, window_bounds = array<i64: 32, 128>}]} {
    %c0 = arith.constant 0 : index
    %c0_0 = arith.constant 0 : index
    %0 = vector.load %arg1[%c0, %c0_0] : memref<32x128xf32, #tpu.memory_space<vmem>>, vector<32x128xf32>
    %c0_1 = arith.constant 0 : index
    %c0_2 = arith.constant 0 : index
    %1 = vector.load %arg2[%c0_1, %c0_2] : memref<32x32xf32, #tpu.memory_space<vmem>>, vector<32x32xf32>
    %cst = arith.constant dense<0.000000e+00> : vector<32x128xf32>
    %2 = tpu.matmul %1, %0, %cst {dimension_numbers = #tpu.dot_dimension_numbers<[1], [0], [0], [1], [0, 0, 1, 1], [], []>} : vector<32x32xf32>, vector<32x128xf32>, vector<32x128xf32> -> vector<32x128xf32>
    %c0_3 = arith.constant 0 : index
    %c0_4 = arith.constant 0 : index
    %3 = vector.load %arg3[%c0_3, %c0_4] : memref<32x1xf32, #tpu.memory_space<vmem>>, vector<32x1xf32>
    %4 = vector.broadcast %3 : vector<32x1xf32> to vector<32x128xf32>
    %5 = arith.addf %2, %4 : vector<32x128xf32>
    %cst_5 = arith.constant 2.000000e+01 : f32
    %6 = vector.broadcast %cst_5 : f32 to vector<32x128xf32>
    %7 = arith.minimumf %5, %6 : vector<32x128xf32>
    %cst_6 = arith.constant 2.000000e+01 : f32
    %8 = vector.broadcast %cst_6 : f32 to vector<32x128xf32>
    %9 = arith.cmpf ogt, %5, %8 : vector<32x128xf32>
    %10 = math.exp %7 : vector<32x128xf32>
    %11 = math.log1p %10 : vector<32x128xf32>
    %12 = arith.select %9, %5, %11 : vector<32x128xi1>, vector<32x128xf32>
    %c0_7 = arith.constant 0 : index
    %c0_8 = arith.constant 0 : index
    %13 = vector.load %arg4[%c0_7, %c0_8] : memref<32x32xf32, #tpu.memory_space<vmem>>, vector<32x32xf32>
    %cst_9 = arith.constant dense<0.000000e+00> : vector<32x128xf32>
    %14 = tpu.matmul %13, %12, %cst_9 {dimension_numbers = #tpu.dot_dimension_numbers<[1], [0], [0], [1], [0, 0, 1, 1], [], []>} : vector<32x32xf32>, vector<32x128xf32>, vector<32x128xf32> -> vector<32x128xf32>
    %c0_10 = arith.constant 0 : index
    %c0_11 = arith.constant 0 : index
    %15 = vector.load %arg5[%c0_10, %c0_11] : memref<32x1xf32, #tpu.memory_space<vmem>>, vector<32x1xf32>
    %16 = vector.broadcast %15 : vector<32x1xf32> to vector<32x128xf32>
    %17 = arith.addf %14, %16 : vector<32x128xf32>
    %18 = arith.addf %17, %0 : vector<32x128xf32>
    %c0_12 = arith.constant 0 : index
    %c0_13 = arith.constant 0 : index
    %19 = vector.load %arg6[%c0_12, %c0_13] : memref<32x128xf32, #tpu.memory_space<vmem>>, vector<32x128xf32>
    tpu.vector_store %arg6[%c0_12, %c0_13], %18 {strides = array<i32>} : memref<32x128xf32, #tpu.memory_space<vmem>>, vector<32x128xf32>,
    return
  }
  func.func @transform_0(%arg0: i32) -> (i32, i32) {
    %c0_i32 = arith.constant 0 : i32
    %c0_i32_0 = arith.constant 0 : i32
    return %c0_i32, %arg0 : i32, i32
  }
  func.func @transform_1(%arg0: i32) -> (i32, i32) {
    %c0_i32 = arith.constant 0 : i32
    %c0_i32_0 = arith.constant 0 : i32
    %c0_i32_1 = arith.constant 0 : i32
    return %c0_i32, %c0_i32_0 : i32, i32
  }
  func.func @transform_2(%arg0: i32) -> (i32, i32) {
    %c0_i32 = arith.constant 0 : i32
    %c0_i32_0 = arith.constant 0 : i32
    %c0_i32_1 = arith.constant 0 : i32
    return %c0_i32, %c0_i32_0 : i32, i32
  }
  func.func @transform_3(%arg0: i32) -> (i32, i32) {
    %c0_i32 = arith.constant 0 : i32
    %c0_i32_0 = arith.constant 0 : i32
    %c0_i32_1 = arith.constant 0 : i32
    return %c0_i32, %c0_i32_0 : i32, i32
  }
  func.func @transform_4(%arg0: i32) -> (i32, i32) {
    %c0_i32 = arith.constant 0 : i32
    %c0_i32_0 = arith.constant 0 : i32
    %c0_i32_1 = arith.constant 0 : i32
    return %c0_i32, %c0_i32_0 : i32, i32
  }
  func.func @transform_5(%arg0: i32) -> (i32, i32) {
    %c0_i32 = arith.constant 0 : i32
    %c0_i32_0 = arith.constant 0 : i32
    return %c0_i32, %arg0 : i32, i32
  }
}

</mosaic_0001>

<llo_original>
// kernel: tpu_custom_call.1
$region0: #{tpu_custom_call.1}
  #allocation0 [shape = 'u32[]', space=smem, size = 0x4, offset = 0x4, fixed_abs, tag = 'smem constant byte address 0x4 - core index']
  #allocation1 [shape = 'u32[72,128]{1,0:T(1,128)}', space=vmem, size = 0x9000, scoped, tag = 'internal scratch']
  %s0 = inlined_call_operand.vmem [shape: f32[32,128], index: 0, kind: input, shape index: {}]
  %s1 = inlined_call_operand.vmem [shape: f32[32,32], index: 1, kind: input, shape index: {}]
  %s2 = inlined_call_operand.vmem [shape: f32[32,1], index: 2, kind: input, shape index: {}]
  %s3 = inlined_call_operand.hbm [shape: f32[32,32], index: 3, kind: input, shape index: {}]
  %s4 = inlined_call_operand.vmem [shape: f32[32,1], index: 4, kind: input, shape index: {}]
  %s5 = inlined_call_operand.hbm [shape: f32[32,128], index: 5, kind: output, shape index: {}]
  %s6 = sld [smem:[#allocation0]]
  $region34: #{tpu_custom_call.1} parent=0
    _
  %s8 = ssub.s32 1, %s6
  %s9 = scalar_select 0, %s8, %s6
  $region1: #{tpu_custom_call.1} parent=0
    #allocation2 [shape = 'u8[16384]{0}', space=vmem, size = 0x4000, scoped, tag = 'input window, operand 3, single buffered']
    #allocation3 [shape = 's32[1]{0}', space=sflag, size = 0x4, scoped, tag = 'scoped memory for tpu_custom_call.1']
    #allocation4 [shape = 's32[1]{0}', space=sflag, size = 0x4, scoped, tag = 'scoped memory for tpu_custom_call.1']
    #allocation5 [shape = 'u8[16384]{0}', space=vmem, size = 0x4000, scoped, tag = 'output window, operand 0, single buffered']
    %10 = vsyncpa [#allocation3], 0
    %11 = vsyncpa [#allocation4], 0
    // Predicated region
    $region2: #{tpu_custom_call.1} parent=1 // pred_check
      _
    $region3: #{tpu_custom_call.1} parent=1 // pred_check_branch
      %13 = sbr.rel (0) target = $region5
    $region4: #{tpu_custom_call.1} parent=1 // pred_region
      _
    $region5: #{tpu_custom_call.1} parent=1 // pred_fallthru
      _
    // Predicated region
    $region6: #{tpu_custom_call.1} parent=1 // pred_check
      _
    $region7: #{tpu_custom_call.1} parent=1 // pred_check_branch
      %15 = sbr.rel (0) target = $region9
    $region8: #{tpu_custom_call.1} parent=1 // pred_region
      _
    $region9: #{tpu_custom_call.1} parent=1 // pred_fallthru
      _
    // Predicated region
    $region10: #{tpu_custom_call.1} parent=1 // pred_check
      _
    $region11: #{tpu_custom_call.1} parent=1 // pred_check_branch
      %17 = sbr.rel (0) target = $region13
    $region12: #{tpu_custom_call.1} parent=1 // pred_region
      _
    $region13: #{tpu_custom_call.1} parent=1 // pred_fallthru
      _
    // Predicated region
    $region14: #{tpu_custom_call.1} parent=1 // pred_check
      _
    $region15: #{tpu_custom_call.1} parent=1 // pred_check_branch
      %19 = sbr.rel (0) target = $region17
    $region16: #{tpu_custom_call.1} parent=1 // pred_region
      %21 = vsyncadd [#allocation3], 0
      %s22 = sshll.u32 %s3, 4
      %s23 = int_to_ptr.hbm [resolvable:$true] %s22
      %s24 = sshll.u32 [#allocation2], 4
      %s25 = int_to_ptr.vmem [resolvable:$true] %s24
      %30 = dma.hbm_to_vmem [thread:$0]  %s23, 512, %s25, [#allocation3], 128, 128, 8
    $region17: #{tpu_custom_call.1} parent=1 // pred_fallthru
      _
    // Predicated region
    $region18: #{tpu_custom_call.1} parent=1 // pred_check
      _
    $region19: #{tpu_custom_call.1} parent=1 // pred_check_branch
      %32 = sbr.rel (0) target = $region21
    $region20: #{tpu_custom_call.1} parent=1 // pred_region
      _
    $region21: #{tpu_custom_call.1} parent=1 // pred_fallthru
      _
    // Predicated region
    $region22: #{tpu_custom_call.1} parent=1 // pred_check
      _
    $region23: #{tpu_custom_call.1} parent=1 // pred_check_branch
      %34 = sbr.rel (0) target = $region25
    $region24: #{tpu_custom_call.1} parent=1 // pred_region
      %36 = dma.done [#allocation3], 512
    $region25: #{tpu_custom_call.1} parent=1 // pred_fallthru
      _
    %v37 = vld [vmem:[%s0] sm:$0xff]
    %v38 = vld [vmem:[%s0 + $0x8] sm:$0xff]
    %v39 = vld [vmem:[%s0 + $0x10] sm:$0xff]
    %v40 = vld [vmem:[%s0 + $0x18] sm:$0xff]
    %v41 = vld [vmem:[%s1] sm:$0xff]
    %v42 = vld [vmem:[%s1 + $0x8] sm:$0xff]
    %v43 = vld [vmem:[%s1 + $0x10] sm:$0xff]
    %v44 = vld [vmem:[%s1 + $0x18] sm:$0xff]
    %v45 = vld [vmem:[%s2] sm:$0xff]
    %v46 = vld [vmem:[%s2 + $0x8] sm:$0xff]
    %v47 = vld [vmem:[%s2 + $0x10] sm:$0xff]
    %v48 = vld [vmem:[%s2 + $0x18] sm:$0xff]
    %50 = vset.pattern.permute.xlu0 0
    %51 = vperm.xlu0 %50, %v45
    %v52 = vpop.permute.xlu0 %51
    %55 = vset.pattern.permute.xlu0 0
    %56 = vperm.xlu0 %55, %v46
    %v57 = vpop.permute.xlu0 %56
    %60 = vset.pattern.permute.xlu0 0
    %61 = vperm.xlu0 %60, %v47
    %v62 = vpop.permute.xlu0 %61
    %65 = vset.pattern.permute.xlu0 0
    %66 = vperm.xlu0 %65, %v48
    %v67 = vpop.permute.xlu0 %66
    %vm69 = vcmask 261120
    %v71 = vsel %vm69, %v41, 0
    %v74 = vsel %vm69, %v42, 0
    %v77 = vsel %vm69, %v43, 0
    %v80 = vsel %vm69, %v44, 0
    %82 = vmatpush.msra.mxu0 0.0
    %83 = vmatpush.msra.mxu0 0.0
    %84 = vmatpush.msra.mxu0 0.0
    %85 = vmatpush.msra.mxu0 0.0
    %86 = vmatpush.msra.mxu0 0.0
    %87 = vmatpush.msra.mxu0 0.0
    %88 = vmatpush.msra.mxu0 0.0
    %89 = vmatpush.msra.mxu0 0.0
    %90 = vmatpush.msra.mxu0 0.0
    %91 = vmatpush.msra.mxu0 0.0
    %92 = vmatpush.msra.mxu0 0.0
    %93 = vmatpush.msra.mxu0 0.0
    %94 = vmatpush.msra.mxu0 %v40
    %95 = vmatpush.msra.mxu0 %v39
    %96 = vmatpush.msra.mxu0 %v38
    %97 = vmatpush.msra.mxu0 %v37
    %98 = vmatmul.f32.gmra.mxu0 %v71
    %v99 = vpop.f32.mrf.mxu0
    %v100 = vadd.f32 %v52, %v99
    %101 = vmatmul.f32.gmra.mxu0 %v74
    %v102 = vpop.f32.mrf.mxu0
    %v103 = vadd.f32 %v57, %v102
    %104 = vmatmul.f32.gmra.mxu0 %v77
    %v105 = vpop.f32.mrf.mxu0
    %v106 = vadd.f32 %v62, %v105
    %107 = vmatmul.f32.gmra.mxu0 %v80
    %v108 = vpop.f32.mrf.mxu0
    %v109 = vadd.f32 %v67, %v108
    %110 = vdwg.mxu0
    %v111 = vmin.f32 %v100, 20.0
    %v112 = vmin.f32 %v103, 20.0
    %v113 = vmin.f32 %v106, 20.0
    %v114 = vmin.f32 %v109, 20.0
    %vm115 = vcmp.gt.f32.partialorder %v100, 20.0
    %vm116 = vcmp.gt.f32.partialorder %v103, 20.0
    %vm117 = vcmp.gt.f32.partialorder %v106, 20.0
    %vm118 = vcmp.gt.f32.partialorder %v109, 20.0
    %v119 = vmul.f32 %v111, 1.442695
    %v120 = vpow.pop %v119
    %v121 = vmul.f32 %v112, 1.442695
    %v122 = vpow.pop %v121
    %v123 = vmul.f32 %v113, 1.442695
    %v124 = vpow.pop %v123
    %v125 = vmul.f32 %v114, 1.442695
    %v126 = vpow.pop %v125
    %v127 = vadd.f32 %v120, 1.0
    %v128 = vlog2.pop %v127
    %v129 = vmul.f32 %v128, 0.6931472
    %v130 = vmul.f32 -0.5, %v120
    %v131 = vadd.f32 %v130, 1.0
    %v132 = vmul.f32 %v131, %v120
    %v133 = vand.u32 2147483647, %v120
    %vm134 = vcmp.lt.f32.partialorder %v133, 0.0004427343
    %v135 = vsel %vm134, %v132, %v129
    %v136 = vadd.f32 %v122, 1.0
    %v137 = vlog2.pop %v136
    %v138 = vmul.f32 %v137, 0.6931472
    %v139 = vmul.f32 -0.5, %v122
    %v140 = vadd.f32 %v139, 1.0
    %v141 = vmul.f32 %v140, %v122
    %v142 = vand.u32 2147483647, %v122
    %vm143 = vcmp.lt.f32.partialorder %v142, 0.0004427343
    %v144 = vsel %vm143, %v141, %v138
    %v145 = vadd.f32 %v124, 1.0
    %v146 = vlog2.pop %v145
    %v147 = vmul.f32 %v146, 0.6931472
    %v148 = vmul.f32 -0.5, %v124
    %v149 = vadd.f32 %v148, 1.0
    %v150 = vmul.f32 %v149, %v124
    %v151 = vand.u32 2147483647, %v124
    %vm152 = vcmp.lt.f32.partialorder %v151, 0.0004427343
    %v153 = vsel %vm152, %v150, %v147
    %v154 = vadd.f32 %v126, 1.0
    %v155 = vlog2.pop %v154
    %v156 = vmul.f32 %v155, 0.6931472
    %v157 = vmul.f32 -0.5, %v126
    %v158 = vadd.f32 %v157, 1.0
    %v159 = vmul.f32 %v158, %v126
    %v160 = vand.u32 2147483647, %v126
    %vm161 = vcmp.lt.f32.partialorder %v160, 0.0004427343
    %v162 = vsel %vm161, %v159, %v156
    %v163 = vsel %vm115, %v100, %v135
    %v164 = vsel %vm116, %v103, %v144
    %v165 = vsel %vm117, %v106, %v153
    %v166 = vsel %vm118, %v109, %v162
    %v167 = vld [vmem:[#allocation2] sm:$0xff]
    %v168 = vld [vmem:[#allocation2 + $0x8] sm:$0xff]
    %v169 = vld [vmem:[#allocation2 + $0x10] sm:$0xff]
    %v170 = vld [vmem:[#allocation2 + $0x18] sm:$0xff]
    %v171 = vld [vmem:[%s4] sm:$0xff]
    %v172 = vld [vmem:[%s4 + $0x8] sm:$0xff]
    %v173 = vld [vmem:[%s4 + $0x10] sm:$0xff]
    %v174 = vld [vmem:[%s4 + $0x18] sm:$0xff]
    %176 = vset.pattern.permute.xlu0 0
    %177 = vperm.xlu0 %176, %v171
    %v178 = vpop.permute.xlu0 %177
    %181 = vset.pattern.permute.xlu0 0
    %182 = vperm.xlu0 %181, %v172
    %v183 = vpop.permute.xlu0 %182
    %186 = vset.pattern.permute.xlu0 0
    %187 = vperm.xlu0 %186, %v173
    %v188 = vpop.permute.xlu0 %187
    %191 = vset.pattern.permute.xlu0 0
    %192 = vperm.xlu0 %191, %v174
    %v193 = vpop.permute.xlu0 %192
    %v196 = vsel %vm69, %v167, 0
    %v199 = vsel %vm69, %v168, 0
    %v202 = vsel %vm69, %v169, 0
    %v205 = vsel %vm69, %v170, 0
    %207 = vmatpush.msra.mxu0 0.0
    %208 = vmatpush.msra.mxu0 0.0
    %209 = vmatpush.msra.mxu0 0.0
    %210 = vmatpush.msra.mxu0 0.0
    %211 = vmatpush.msra.mxu0 0.0
    %212 = vmatpush.msra.mxu0 0.0
    %213 = vmatpush.msra.mxu0 0.0
    %214 = vmatpush.msra.mxu0 0.0
    %215 = vmatpush.msra.mxu0 0.0
    %216 = vmatpush.msra.mxu0 0.0
    %217 = vmatpush.msra.mxu0 0.0
    %218 = vmatpush.msra.mxu0 0.0
    %219 = vmatpush.msra.mxu0 %v166
    %220 = vmatpush.msra.mxu0 %v165
    %221 = vmatpush.msra.mxu0 %v164
    %222 = vmatpush.msra.mxu0 %v163
    %223 = vmatmul.f32.gmra.mxu0 %v196
    %v224 = vpop.f32.mrf.mxu0
    %v225 = vadd.f32 %v178, %v224
    %226 = vmatmul.f32.gmra.mxu0 %v199
    %v227 = vpop.f32.mrf.mxu0
    %v228 = vadd.f32 %v183, %v227
    %229 = vmatmul.f32.gmra.mxu0 %v202
    %v230 = vpop.f32.mrf.mxu0
    %v231 = vadd.f32 %v188, %v230
    %232 = vmatmul.f32.gmra.mxu0 %v205
    %v233 = vpop.f32.mrf.mxu0
    %v234 = vadd.f32 %v193, %v233
    %235 = vdwg.mxu0
    %v236 = vadd.f32 %v225, %v37
    %v237 = vadd.f32 %v228, %v38
    %v238 = vadd.f32 %v231, %v39
    %v239 = vadd.f32 %v234, %v40
    %240 = vst [vmem:[#allocation5] sm:$0xff] %v236
    %241 = vst [vmem:[#allocation5 + $0x8] sm:$0xff] %v237
    %242 = vst [vmem:[#allocation5 + $0x10] sm:$0xff] %v238
    %243 = vst [vmem:[#allocation5 + $0x18] sm:$0xff] %v239
    // Predicated region
    $region26: #{tpu_custom_call.1} parent=1 // pred_check
      _
    $region27: #{tpu_custom_call.1} parent=1 // pred_check_branch
      %245 = sbr.rel (0) target = $region29
    $region28: #{tpu_custom_call.1} parent=1 // pred_region
      %247 = vsyncadd [#allocation4], 0
      %s248 = sshll.u32 [#allocation5], 4
      %s249 = int_to_ptr.vmem [resolvable:$true] %s248
      %s250 = sshll.u32 %s5, 4
      %s251 = int_to_ptr.hbm [resolvable:$true] %s250
      %256 = dma.vmem_to_hbm [thread:$0]  %s249, 512, %s251, [#allocation4], 128, 128, 8
    $region29: #{tpu_custom_call.1} parent=1 // pred_fallthru
      _
    // Predicated region
    $region30: #{tpu_custom_call.1} parent=1 // pred_check
      _
    $region31: #{tpu_custom_call.1} parent=1 // pred_check_branch
      %258 = sbr.rel (0) target = $region33
    $region32: #{tpu_custom_call.1} parent=1 // pred_region
      %260 = dma.done [#allocation4], 512
    $region33: #{tpu_custom_call.1} parent=1 // pred_fallthru
      _
    %261 = vsyncpa [#allocation3], 1
    %262 = vsyncpa [#allocation4], 1

</llo_original>
